<compile_context>
chip_gen: v7x
topology: tpu7x:2x2x1
jax: 0.10.0
libtpu: 0.0.40
codegen_flags: <defaults>
</compile_context>

<pallas_src>
import jax
import jax.numpy as jnp
from jax.experimental import pallas as pl
from jax.experimental.pallas import tpu as pltpu


def _round_up(x, m):
    return ((x + m - 1) // m) * m


def _largest_dividing_tile(total, unit, max_tile):
    """Largest multiple of `unit` that divides `total` and is <= max_tile.

    `total` must be a multiple of `unit`; falls back to `unit` (which always
    divides `total`) if nothing larger fits under `max_tile`.
    """
    best = unit
    t = unit
    limit = min(max_tile, total)
    while t <= limit:
        if total % t == 0:
            best = t
        t += unit
    return best


def _padded_vmem_bytes(rows, cols, itemsize=4):
    # f32 VMEM footprint of a (rows, cols) buffer after (8, 128) layout tiling.
    return _round_up(rows, 8) * _round_up(cols, 128) * itemsize


def nmf_matmul_kernel(u_ref, v_ref, o_ref):
    # One MXU dot per grid point with f32 accumulation.  K is tiny, so the
    # kernel is output-bandwidth bound; all the optimization work lives in the
    # wrapper keeping HBM traffic at the minimum.
    o_ref[...] = jnp.dot(
        u_ref[...], v_ref[...], preferred_element_type=jnp.float32
    ).astype(o_ref.dtype)


def nmf_sgd_forward(U, V_T, *, max_tm=1024, max_tn=2048,
                    resident_vt_bytes=4 * 1024 * 1024):
    """Pallas TPU implementation of NMF_SGD.forward(): U @ V_T (float32)."""
    F, K = U.shape
    K2, D = V_T.shape
    assert K == K2, "inner dimensions must match"

    if U.dtype != jnp.float32:
        U = U.astype(jnp.float32)
    if V_T.dtype != jnp.float32:
        V_T = V_T.astype(jnp.float32)

    # Pad only the dims that need it: F -> multiple of 8, D -> multiple of 128.
    # K is intentionally NOT padded (block dim == full array dim is legal).
    Fp = _round_up(max(F, 8), 8)
    Dp = _round_up(max(D, 128), 128)

    # Divisor-based tile selection: output HBM traffic is exactly Fp * Dp.
    tm = _largest_dividing_tile(Fp, 8, max_tm)
    tn = _largest_dividing_tile(Dp, 128, max_tn)

    # v7x has 2 TensorCores per chip: for nontrivial problems make sure the
    # (parallel) F axis has >= 2 blocks so the grid can shard across cores.
    if Fp * Dp * 4 >= (2 << 20) and Fp // tm < 2:
        tm = _largest_dividing_tile(Fp, 8, max(8, Fp // 2))

    grid_m = Fp // tm
    grid_n = Dp // tn

    # Keep V_T fully VMEM-resident (constant block index -> DMA'd exactly
    # once) when small; threshold is on the single-buffer VMEM footprint.
    vt_resident = _padded_vmem_bytes(K, Dp) <= resident_vt_bytes

    # Explicit VMEM budget: double-buffered U + out blocks, plus V_T (counted
    # double-buffered even in the resident case in case Buffered(1) is
    # unsupported).  Cap at 40 MiB: safe on v7x's 64 MiB physical per-core
    # VMEM, and well under v5e/v6e's 128 MiB physical.
    vmem_needed = (2 * _padded_vmem_bytes(tm, K)
                   + 2 * _padded_vmem_bytes(tm, tn)
                   + 2 * _padded_vmem_bytes(K, Dp if vt_resident else tn))
    vmem_limit = min(max(2 * vmem_needed, 16 << 20), 40 << 20)

    Up = U if Fp == F else jnp.pad(U, ((0, Fp - F), (0, 0)))
    Vp = V_T if Dp == D else jnp.pad(V_T, ((0, 0), (0, Dp - D)))

    compiler_params = pltpu.CompilerParams(
        dimension_semantics=("parallel", "parallel"),
        vmem_limit_bytes=vmem_limit,
    )
    out_shape = jax.ShapeDtypeStruct((Fp, Dp), jnp.float32)

    def build(single_buffer_vt):
        if vt_resident:
            grid = (grid_m, grid_n)
            u_spec = pl.BlockSpec((tm, K), lambda i, j: (i, 0))
            o_spec = pl.BlockSpec((tm, tn), lambda i, j: (i, j))
            if single_buffer_vt:
                # Constant block index -> never re-fetched; double-buffering
                # it would be pure VMEM waste.
                v_spec = pl.BlockSpec((K, Dp), lambda i, j: (0, 0),
                                      pipeline_mode=pl.Buffered(1))
            else:
                v_spec = pl.BlockSpec((K, Dp), lambda i, j: (0, 0))
        else:
            # Streaming V_T: pick grid order so the smaller operand is the one
            # that gets re-read across the outer axis.
            vt_refetch = (grid_m - 1) * K * Dp     # j fastest -> re-reads V_T
            u_refetch = (grid_n - 1) * Fp * K      # i fastest -> re-reads U
            if vt_refetch <= u_refetch:
                grid = (grid_m, grid_n)
                u_spec = pl.BlockSpec((tm, K), lambda i, j: (i, 0))
                v_spec = pl.BlockSpec((K, tn), lambda i, j: (0, j))
                o_spec = pl.BlockSpec((tm, tn), lambda i, j: (i, j))
            else:
                grid = (grid_n, grid_m)
                u_spec = pl.BlockSpec((tm, K), lambda j, i: (i, 0))
                v_spec = pl.BlockSpec((K, tn), lambda j, i: (0, j))
                o_spec = pl.BlockSpec((tm, tn), lambda j, i: (i, j))
        return pl.pallas_call(
            nmf_matmul_kernel,
            out_shape=out_shape,
            grid=grid,
            in_specs=[u_spec, v_spec],
            out_specs=o_spec,
            compiler_params=compiler_params,
        )

    if vt_resident:
        try:
            out = build(True)(Up, Vp)
        except Exception:
            # pipeline_mode=pl.Buffered(1) not supported on this jax version:
            # fall back to the default (double-buffered) resident spec.
            out = build(False)(Up, Vp)
    else:
        out = build(False)(Up, Vp)

    # TODO(synk): the NMF residual / SGD update could be fused here to avoid
    # re-reading the F x D product from HBM, but the module's forward() only
    # computes U @ V_T, so we keep forward-pass semantics.
    if Fp == F and Dp == D:
        return out
    return out[:F, :D]


if __name__ == "__main__":
    # Shapes consistent with the module: num_cluster = 20 (as in main.py).
    num_cluster = 20
    num_feature = 128
    num_document = 256

    key = jax.random.PRNGKey(0)
    ku, kv = jax.random.split(key)

    # Deterministic parameter init mirroring 0.001 * torch.rand(...).
    U = 0.001 * jax.random.uniform(
        ku, (num_feature, num_cluster), dtype=jnp.float32)
    V_T = 0.001 * jax.random.uniform(
        kv, (num_cluster, num_document), dtype=jnp.float32)

    out = nmf_sgd_forward(U, V_T)
    out = jax.block_until_ready(out)

    # Correctness check against plain JAX reference.
    ref = U @ V_T
    assert out.shape == (num_feature, num_document)
    assert jnp.allclose(out, ref, rtol=1e-5, atol=1e-8), "mismatch vs reference"

    print("KERNEL_OK")
</pallas_src>

<mosaic_0001>
module attributes {stable_mosaic.version = 11 : i64} {
  func.func @nmf_matmul_kernel(%arg0: i32, %arg1: i32, %arg2: memref<128x20xf32, #tpu.memory_space<vmem>>, %arg3: memref<20x256xf32, #tpu.memory_space<vmem>>, %arg4: memref<128x256xf32, #tpu.memory_space<vmem>>) attributes {dimension_semantics = [#tpu.dimension_semantics<parallel>, #tpu.dimension_semantics<parallel>], iteration_bounds = array<i64: 1, 1>, scalar_prefetch = 0 : i64, scratch_operands = 0 : i64, tpu.core_type = #tpu.core_type<tc>, window_params = [{transform_indices = @transform_0, window_bounds = array<i64: 128, 20>}, {pipeline_mode = #tpu.pipeline_mode<synchronous>, transform_indices = @transform_1, window_bounds = array<i64: 20, 256>}, {transform_indices = @transform_2, window_bounds = array<i64: 128, 256>}]} {
    %c0 = arith.constant 0 : index
    %c0_0 = arith.constant 0 : index
    %0 = vector.load %arg2[%c0, %c0_0] : memref<128x20xf32, #tpu.memory_space<vmem>>, vector<128x20xf32>
    %c0_1 = arith.constant 0 : index
    %c0_2 = arith.constant 0 : index
    %1 = vector.load %arg3[%c0_1, %c0_2] : memref<20x256xf32, #tpu.memory_space<vmem>>, vector<20x256xf32>
    %cst = arith.constant dense<0.000000e+00> : vector<128x256xf32>
    %2 = tpu.matmul %0, %1, %cst {dimension_numbers = #tpu.dot_dimension_numbers<[1], [0], [0], [1], [0, 0, 1, 1], [], []>} : vector<128x20xf32>, vector<20x256xf32>, vector<128x256xf32> -> vector<128x256xf32>
    %c0_3 = arith.constant 0 : index
    %c0_4 = arith.constant 0 : index
    %3 = vector.load %arg4[%c0_3, %c0_4] : memref<128x256xf32, #tpu.memory_space<vmem>>, vector<128x256xf32>
    tpu.vector_store %arg4[%c0_3, %c0_4], %2 {strides = array<i32>} : memref<128x256xf32, #tpu.memory_space<vmem>>, vector<128x256xf32>,
    return
  }
  func.func @transform_0(%arg0: i32, %arg1: i32) -> (i32, i32) {
    %c0_i32 = arith.constant 0 : i32
    %c0_i32_0 = arith.constant 0 : i32
    return %arg0, %c0_i32 : i32, i32
  }
  func.func @transform_1(%arg0: i32, %arg1: i32) -> (i32, i32) {
    %c0_i32 = arith.constant 0 : i32
    %c0_i32_0 = arith.constant 0 : i32
    %c0_i32_1 = arith.constant 0 : i32
    return %c0_i32, %c0_i32_0 : i32, i32
  }
  func.func @transform_2(%arg0: i32, %arg1: i32) -> (i32, i32) {
    %c0_i32 = arith.constant 0 : i32
    return %arg0, %arg1 : i32, i32
  }
}

module attributes {stable_mosaic.version = 11 : i64} {
  func.func @nmf_matmul_kernel(%arg0: i32, %arg1: i32, %arg2: memref<128x20xf32, #tpu.memory_space<vmem>>, %arg3: memref<20x256xf32, #tpu.memory_space<vmem>>, %arg4: memref<128x256xf32, #tpu.memory_space<vmem>>) attributes {dimension_semantics = [#tpu.dimension_semantics<parallel>, #tpu.dimension_semantics<parallel>], iteration_bounds = array<i64: 1, 1>, scalar_prefetch = 0 : i64, scratch_operands = 0 : i64, tpu.core_type = #tpu.core_type<tc>, window_params = [{transform_indices = @transform_0, window_bounds = array<i64: 128, 20>}, {pipeline_mode = #tpu.pipeline_mode<synchronous>, transform_indices = @transform_1, window_bounds = array<i64: 20, 256>}, {transform_indices = @transform_2, window_bounds = array<i64: 128, 256>}]} {
    %c0 = arith.constant 0 : index
    %c0_0 = arith.constant 0 : index
    %0 = vector.load %arg2[%c0, %c0_0] : memref<128x20xf32, #tpu.memory_space<vmem>>, vector<128x20xf32>
    %c0_1 = arith.constant 0 : index
    %c0_2 = arith.constant 0 : index
    %1 = vector.load %arg3[%c0_1, %c0_2] : memref<20x256xf32, #tpu.memory_space<vmem>>, vector<20x256xf32>
    %cst = arith.constant dense<0.000000e+00> : vector<128x256xf32>
    %2 = tpu.matmul %0, %1, %cst {dimension_numbers = #tpu.dot_dimension_numbers<[1], [0], [0], [1], [0, 0, 1, 1], [], []>} : vector<128x20xf32>, vector<20x256xf32>, vector<128x256xf32> -> vector<128x256xf32>
    %c0_3 = arith.constant 0 : index
    %c0_4 = arith.constant 0 : index
    %3 = vector.load %arg4[%c0_3, %c0_4] : memref<128x256xf32, #tpu.memory_space<vmem>>, vector<128x256xf32>
    tpu.vector_store %arg4[%c0_3, %c0_4], %2 {strides = array<i32>} : memref<128x256xf32, #tpu.memory_space<vmem>>, vector<128x256xf32>,
    return
  }
  func.func @transform_0(%arg0: i32, %arg1: i32) -> (i32, i32) {
    %c0_i32 = arith.constant 0 : i32
    %c0_i32_0 = arith.constant 0 : i32
    return %arg0, %c0_i32 : i32, i32
  }
  func.func @transform_1(%arg0: i32, %arg1: i32) -> (i32, i32) {
    %c0_i32 = arith.constant 0 : i32
    %c0_i32_0 = arith.constant 0 : i32
    %c0_i32_1 = arith.constant 0 : i32
    return %c0_i32, %c0_i32_0 : i32, i32
  }
  func.func @transform_2(%arg0: i32, %arg1: i32) -> (i32, i32) {
    %c0_i32 = arith.constant 0 : i32
    return %arg0, %arg1 : i32, i32
  }
}

</mosaic_0001>

<llo_original>
// kernel: tpu_custom_call.1
$region0: #{tpu_custom_call.1}
  #allocation0 [shape = 'u32[]', space=smem, size = 0x4, offset = 0x4, fixed_abs, tag = 'smem constant byte address 0x4 - core index']
  #allocation1 [shape = 'u32[144,128]{1,0:T(1,128)}', space=vmem, size = 0x12000, scoped, tag = 'internal scratch']
  %s0 = inlined_call_operand.vmem [shape: f32[128,20], index: 0, kind: input, shape index: {}]
  %s1 = inlined_call_operand.vmem [shape: f32[20,256], index: 1, kind: input, shape index: {}]
  %s2 = inlined_call_operand.hbm [shape: f32[128,256], index: 2, kind: output, shape index: {}]
  %s3 = sld [smem:[#allocation0]]
  $region18: #{tpu_custom_call.1} parent=0
    _
  %s5 = ssub.s32 1, %s3
  %s6 = scalar_select 0, %s5, %s3
  $region1: #{tpu_custom_call.1} parent=0
    #allocation2 [shape = 'u8[131072]{0}', space=vmem, size = 0x20000, scoped, tag = 'output window, operand 0, single buffered']
    #allocation3 [shape = 's32[1]{0}', space=sflag, size = 0x4, scoped, tag = 'scoped memory for tpu_custom_call.1']
    %7 = vsyncpa [#allocation3], 0
    // Predicated region
    $region2: #{tpu_custom_call.1} parent=1 // pred_check
      _
    $region3: #{tpu_custom_call.1} parent=1 // pred_check_branch
      %9 = sbr.rel (0) target = $region5
    $region4: #{tpu_custom_call.1} parent=1 // pred_region
      _
    $region5: #{tpu_custom_call.1} parent=1 // pred_fallthru
      _
    // Predicated region
    $region6: #{tpu_custom_call.1} parent=1 // pred_check
      _
    $region7: #{tpu_custom_call.1} parent=1 // pred_check_branch
      %11 = sbr.rel (0) target = $region9
    $region8: #{tpu_custom_call.1} parent=1 // pred_region
      _
    $region9: #{tpu_custom_call.1} parent=1 // pred_fallthru
      _
    %v12 = vld [vmem:[%s0] sm:$0xff]
    %v13 = vld [vmem:[%s0 + $0x8] sm:$0xff]
    %v14 = vld [vmem:[%s0 + $0x10] sm:$0xff]
    %v15 = vld [vmem:[%s0 + $0x18] sm:$0xff]
    %v16 = vld [vmem:[%s0 + $0x20] sm:$0xff]
    %v17 = vld [vmem:[%s0 + $0x28] sm:$0xff]
    %v18 = vld [vmem:[%s0 + $0x30] sm:$0xff]
    %v19 = vld [vmem:[%s0 + $0x38] sm:$0xff]
    %v20 = vld [vmem:[%s0 + $0x40] sm:$0xff]
    %v21 = vld [vmem:[%s0 + $0x48] sm:$0xff]
    %v22 = vld [vmem:[%s0 + $0x50] sm:$0xff]
    %v23 = vld [vmem:[%s0 + $0x58] sm:$0xff]
    %v24 = vld [vmem:[%s0 + $0x60] sm:$0xff]
    %v25 = vld [vmem:[%s0 + $0x68] sm:$0xff]
    %v26 = vld [vmem:[%s0 + $0x70] sm:$0xff]
    %v27 = vld [vmem:[%s0 + $0x78] sm:$0xff]
    %v28 = vld [vmem:[%s1] sm:$0xff]
    %v29 = vld [vmem:[%s1 + $0x8] sm:$0xff]
    %v30 = vld [vmem:[%s1 + $0x10] sm:$0xff]
    %v31 = vld [vmem:[%s1 + $0x18] sm:$0xff]
    %v32 = vld [vmem:[%s1 + $0x20] sm:$0xf]
    %v33 = vld [vmem:[%s1 + $0x28] sm:$0xf]
    %vm34 = vcmask 162816
    %v36 = vsel %vm34, %v12, 0
    %v39 = vsel %vm34, %v13, 0
    %v42 = vsel %vm34, %v14, 0
    %v45 = vsel %vm34, %v15, 0
    %v48 = vsel %vm34, %v16, 0
    %v51 = vsel %vm34, %v17, 0
    %v54 = vsel %vm34, %v18, 0
    %v57 = vsel %vm34, %v19, 0
    %v60 = vsel %vm34, %v20, 0
    %v63 = vsel %vm34, %v21, 0
    %v66 = vsel %vm34, %v22, 0
    %v69 = vsel %vm34, %v23, 0
    %v72 = vsel %vm34, %v24, 0
    %v75 = vsel %vm34, %v25, 0
    %v78 = vsel %vm34, %v26, 0
    %v81 = vsel %vm34, %v27, 0
    %vm83 = vcmask 1043456
    %v85 = vsel %vm83, %v32, 0
    %v88 = vsel %vm83, %v33, 0
    %90 = vmatprep.subr.mxu0 %v29
    %91 = vmatpush1.msra.mxu0 %v28
    %92 = vmatprep.subr.mxu0 %v31
    %93 = vmatpush1.msra.mxu0 %v30
    %94 = vmatprep.subr.mxu0 %v88
    %95 = vmatpush1.msra.mxu0 %v85
    %96 = vmatprep.subr.mxu0 0.0
    %97 = vmatpush1.msra.mxu0 0.0
    %98 = vmatprep.subr.mxu0 0.0
    %99 = vmatpush1.msra.mxu0 0.0
    %100 = vmatprep.subr.mxu0 0.0
    %101 = vmatpush1.msra.mxu0 0.0
    %102 = vmatprep.subr.mxu0 0.0
    %103 = vmatpush1.msra.mxu0 0.0
    %104 = vmatprep.subr.mxu0 0.0
    %105 = vmatpush1.msra.mxu0 0.0
    %106 = vmatprep.subr.mxu0 0.0
    %107 = vmatpush1.msra.mxu0 0.0
    %108 = vmatprep.subr.mxu0 0.0
    %109 = vmatpush1.msra.mxu0 0.0
    %110 = vmatprep.subr.mxu0 0.0
    %111 = vmatpush1.msra.mxu0 0.0
    %112 = vmatprep.subr.mxu0 0.0
    %113 = vmatpush1.msra.mxu0 0.0
    %114 = vmatprep.subr.mxu0 0.0
    %115 = vmatpush1.msra.mxu0 0.0
    %116 = vmatprep.subr.mxu0 0.0
    %117 = vmatpush1.msra.mxu0 0.0
    %118 = vmatprep.subr.mxu0 0.0
    %119 = vmatpush1.msra.mxu0 0.0
    %120 = vmatprep.subr.mxu0 0.0
    %121 = vmatpush1.msra.mxu0 0.0
    %122 = vmatprep.subr.mxu0 0.0
    %123 = vmatpush1.msra.mxu0 0.0
    %124 = vmatprep.subr.mxu0 0.0
    %125 = vmatpush1.msra.mxu0 0.0
    %126 = vmatprep.subr.mxu0 0.0
    %127 = vmatpush1.msra.mxu0 0.0
    %128 = vmatprep.subr.mxu0 0.0
    %129 = vmatpush1.msra.mxu0 0.0
    %130 = vmatprep.subr.mxu0 0.0
    %131 = vmatpush1.msra.mxu0 0.0
    %132 = vmatprep.subr.mxu0 0.0
    %133 = vmatpush1.msra.mxu0 0.0
    %134 = vmatprep.subr.mxu0 0.0
    %135 = vmatpush1.msra.mxu0 0.0
    %136 = vmatprep.subr.mxu0 0.0
    %137 = vmatpush1.msra.mxu0 0.0
    %138 = vmatprep.subr.mxu0 0.0
    %139 = vmatpush1.msra.mxu0 0.0
    %140 = vmatprep.subr.mxu0 0.0
    %141 = vmatpush1.msra.mxu0 0.0
    %142 = vmatprep.subr.mxu0 0.0
    %143 = vmatpush1.msra.mxu0 0.0
    %144 = vmatprep.subr.mxu0 0.0
    %145 = vmatpush1.msra.mxu0 0.0
    %146 = vmatprep.subr.mxu0 0.0
    %147 = vmatpush1.msra.mxu0 0.0
    %148 = vmatprep.subr.mxu0 0.0
    %149 = vmatpush1.msra.mxu0 0.0
    %150 = vmatprep.subr.mxu0 0.0
    %151 = vmatpush1.msra.mxu0 0.0
    %152 = vmatprep.subr.mxu0 0.0
    %153 = vmatpush1.msra.mxu0 0.0
    %154 = vmatprep.mubr.f32.mxu0 0.0
    %155 = vmatmul.mubr.f32.gmra.mrb[0].mxu0 %v36
    %v156 = vpop.f32.mrb[0].mxu0
    %v157 = vadd.f32 0.0, %v156
    %v158 = vpop.f32.mrb[0].mxu0
    %v159 = vadd.f32 0.0, %v158
    %160 = vmatprep.mubr.f32.mxu0 0.0
    %161 = vmatmul.mubr.f32.gmra.mrb[0].mxu0 %v39
    %v162 = vpop.f32.mrb[0].mxu0
    %v163 = vadd.f32 0.0, %v162
    %v164 = vpop.f32.mrb[0].mxu0
    %v165 = vadd.f32 0.0, %v164
    %166 = vmatprep.mubr.f32.mxu0 0.0
    %167 = vmatmul.mubr.f32.gmra.mrb[0].mxu0 %v42
    %v168 = vpop.f32.mrb[0].mxu0
    %v169 = vadd.f32 0.0, %v168
    %v170 = vpop.f32.mrb[0].mxu0
    %v171 = vadd.f32 0.0, %v170
    %172 = vmatprep.mubr.f32.mxu0 0.0
    %173 = vmatmul.mubr.f32.gmra.mrb[0].mxu0 %v45
    %v174 = vpop.f32.mrb[0].mxu0
    %v175 = vadd.f32 0.0, %v174
    %v176 = vpop.f32.mrb[0].mxu0
    %v177 = vadd.f32 0.0, %v176
    %178 = vmatprep.mubr.f32.mxu0 0.0
    %179 = vmatmul.mubr.f32.gmra.mrb[0].mxu0 %v48
    %v180 = vpop.f32.mrb[0].mxu0
    %v181 = vadd.f32 0.0, %v180
    %v182 = vpop.f32.mrb[0].mxu0
    %v183 = vadd.f32 0.0, %v182
    %184 = vmatprep.mubr.f32.mxu0 0.0
    %185 = vmatmul.mubr.f32.gmra.mrb[0].mxu0 %v51
    %v186 = vpop.f32.mrb[0].mxu0
    %v187 = vadd.f32 0.0, %v186
    %v188 = vpop.f32.mrb[0].mxu0
    %v189 = vadd.f32 0.0, %v188
    %190 = vmatprep.mubr.f32.mxu0 0.0
    %191 = vmatmul.mubr.f32.gmra.mrb[0].mxu0 %v54
    %v192 = vpop.f32.mrb[0].mxu0
    %v193 = vadd.f32 0.0, %v192
    %v194 = vpop.f32.mrb[0].mxu0
    %v195 = vadd.f32 0.0, %v194
    %196 = vmatprep.mubr.f32.mxu0 0.0
    %197 = vmatmul.mubr.f32.gmra.mrb[0].mxu0 %v57
    %v198 = vpop.f32.mrb[0].mxu0
    %v199 = vadd.f32 0.0, %v198
    %v200 = vpop.f32.mrb[0].mxu0
    %v201 = vadd.f32 0.0, %v200
    %202 = vmatprep.mubr.f32.mxu0 0.0
    %203 = vmatmul.mubr.f32.gmra.mrb[0].mxu0 %v60
    %v204 = vpop.f32.mrb[0].mxu0
    %v205 = vadd.f32 0.0, %v204
    %v206 = vpop.f32.mrb[0].mxu0
    %v207 = vadd.f32 0.0, %v206
    %208 = vmatprep.mubr.f32.mxu0 0.0
    %209 = vmatmul.mubr.f32.gmra.mrb[0].mxu0 %v63
    %v210 = vpop.f32.mrb[0].mxu0
    %v211 = vadd.f32 0.0, %v210
    %v212 = vpop.f32.mrb[0].mxu0
    %v213 = vadd.f32 0.0, %v212
    %214 = vmatprep.mubr.f32.mxu0 0.0
    %215 = vmatmul.mubr.f32.gmra.mrb[0].mxu0 %v66
    %v216 = vpop.f32.mrb[0].mxu0
    %v217 = vadd.f32 0.0, %v216
    %v218 = vpop.f32.mrb[0].mxu0
    %v219 = vadd.f32 0.0, %v218
    %220 = vmatprep.mubr.f32.mxu0 0.0
    %221 = vmatmul.mubr.f32.gmra.mrb[0].mxu0 %v69
    %v222 = vpop.f32.mrb[0].mxu0
    %v223 = vadd.f32 0.0, %v222
    %v224 = vpop.f32.mrb[0].mxu0
    %v225 = vadd.f32 0.0, %v224
    %226 = vmatprep.mubr.f32.mxu0 0.0
    %227 = vmatmul.mubr.f32.gmra.mrb[0].mxu0 %v72
    %v228 = vpop.f32.mrb[0].mxu0
    %v229 = vadd.f32 0.0, %v228
    %v230 = vpop.f32.mrb[0].mxu0
    %v231 = vadd.f32 0.0, %v230
    %232 = vmatprep.mubr.f32.mxu0 0.0
    %233 = vmatmul.mubr.f32.gmra.mrb[0].mxu0 %v75
    %v234 = vpop.f32.mrb[0].mxu0
    %v235 = vadd.f32 0.0, %v234
    %v236 = vpop.f32.mrb[0].mxu0
    %v237 = vadd.f32 0.0, %v236
    %238 = vmatprep.mubr.f32.mxu0 0.0
    %239 = vmatmul.mubr.f32.gmra.mrb[0].mxu0 %v78
    %v240 = vpop.f32.mrb[0].mxu0
    %v241 = vadd.f32 0.0, %v240
    %v242 = vpop.f32.mrb[0].mxu0
    %v243 = vadd.f32 0.0, %v242
    %244 = vmatprep.mubr.f32.mxu0 0.0
    %245 = vmatmul.mubr.f32.gmra.mrb[0].mxu0 %v81
    %v246 = vpop.f32.mrb[0].mxu0
    %v247 = vadd.f32 0.0, %v246
    %v248 = vpop.f32.mrb[0].mxu0
    %v249 = vadd.f32 0.0, %v248
    %250 = vdwg.mxu0
    %251 = vst [vmem:[#allocation2] sm:$0xff] %v157
    %252 = vst [vmem:[#allocation2 + $0x8] sm:$0xff] %v159
    %253 = vst [vmem:[#allocation2 + $0x10] sm:$0xff] %v163
    %254 = vst [vmem:[#allocation2 + $0x18] sm:$0xff] %v165
    %255 = vst [vmem:[#allocation2 + $0x20] sm:$0xff] %v169
    %256 = vst [vmem:[#allocation2 + $0x28] sm:$0xff] %v171
    %257 = vst [vmem:[#allocation2 + $0x30] sm:$0xff] %v175
    %258 = vst [vmem:[#allocation2 + $0x38] sm:$0xff] %v177
    %259 = vst [vmem:[#allocation2 + $0x40] sm:$0xff] %v181
    %260 = vst [vmem:[#allocation2 + $0x48] sm:$0xff] %v183
    %261 = vst [vmem:[#allocation2 + $0x50] sm:$0xff] %v187
    %262 = vst [vmem:[#allocation2 + $0x58] sm:$0xff] %v189
    %263 = vst [vmem:[#allocation2 + $0x60] sm:$0xff] %v193
    %264 = vst [vmem:[#allocation2 + $0x68] sm:$0xff] %v195
    %265 = vst [vmem:[#allocation2 + $0x70] sm:$0xff] %v199
    %266 = vst [vmem:[#allocation2 + $0x78] sm:$0xff] %v201
    %267 = vst [vmem:[#allocation2 + $0x80] sm:$0xff] %v205
    %268 = vst [vmem:[#allocation2 + $0x88] sm:$0xff] %v207
    %269 = vst [vmem:[#allocation2 + $0x90] sm:$0xff] %v211
    %270 = vst [vmem:[#allocation2 + $0x98] sm:$0xff] %v213
    %271 = vst [vmem:[#allocation2 + $0xa0] sm:$0xff] %v217
    %272 = vst [vmem:[#allocation2 + $0xa8] sm:$0xff] %v219
    %273 = vst [vmem:[#allocation2 + $0xb0] sm:$0xff] %v223
    %274 = vst [vmem:[#allocation2 + $0xb8] sm:$0xff] %v225
    %275 = vst [vmem:[#allocation2 + $0xc0] sm:$0xff] %v229
    %276 = vst [vmem:[#allocation2 + $0xc8] sm:$0xff] %v231
    %277 = vst [vmem:[#allocation2 + $0xd0] sm:$0xff] %v235
    %278 = vst [vmem:[#allocation2 + $0xd8] sm:$0xff] %v237
    %279 = vst [vmem:[#allocation2 + $0xe0] sm:$0xff] %v241
    %280 = vst [vmem:[#allocation2 + $0xe8] sm:$0xff] %v243
    %281 = vst [vmem:[#allocation2 + $0xf0] sm:$0xff] %v247
    %282 = vst [vmem:[#allocation2 + $0xf8] sm:$0xff] %v249
    // Predicated region
    $region10: #{tpu_custom_call.1} parent=1 // pred_check
      _
    $region11: #{tpu_custom_call.1} parent=1 // pred_check_branch
      %284 = sbr.rel (0) target = $region13
    $region12: #{tpu_custom_call.1} parent=1 // pred_region
      %s286 = ssub.s32 4096, 4096
      %287 = vsyncadd [#allocation3], %s286
      %s288 = sshll.u32 [#allocation2], 4
      %s289 = int_to_ptr.vmem [resolvable:$true] %s288
      %294 = dma.vmem_to_hbm [thread:$0]  %s289, 4096, %s2, [#allocation3], 256, 256, 16
    $region13: #{tpu_custom_call.1} parent=1 // pred_fallthru
      _
    // Predicated region
    $region14: #{tpu_custom_call.1} parent=1 // pred_check
      _
    $region15: #{tpu_custom_call.1} parent=1 // pred_check_branch
      %296 = sbr.rel (0) target = $region17
    $region16: #{tpu_custom_call.1} parent=1 // pred_region
      %297 = dma.done [#allocation3], 4096
    $region17: #{tpu_custom_call.1} parent=1 // pred_fallthru
      _
    %298 = vsyncpa [#allocation3], 1

// kernel: tpu_custom_call.1
$region0: #{tpu_custom_call.1}
  #allocation0 [shape = 'u32[]', space=smem, size = 0x4, offset = 0x4, fixed_abs, tag = 'smem constant byte address 0x4 - core index']
  #allocation1 [shape = 'u32[144,128]{1,0:T(1,128)}', space=vmem, size = 0x12000, scoped, tag = 'internal scratch']
  %s0 = inlined_call_operand.vmem [shape: f32[128,20], index: 0, kind: input, shape index: {}]
  %s1 = inlined_call_operand.vmem [shape: f32[20,256], index: 1, kind: input, shape index: {}]
  %s2 = inlined_call_operand.hbm [shape: f32[128,256], index: 2, kind: output, shape index: {}]
  %s3 = sld [smem:[#allocation0]]
  $region18: #{tpu_custom_call.1} parent=0
    _
  %s5 = ssub.s32 1, %s3
  %s6 = scalar_select 0, %s5, %s3
  $region1: #{tpu_custom_call.1} parent=0
    #allocation2 [shape = 'u8[131072]{0}', space=vmem, size = 0x20000, scoped, tag = 'output window, operand 0, single buffered']
    #allocation3 [shape = 's32[1]{0}', space=sflag, size = 0x4, scoped, tag = 'scoped memory for tpu_custom_call.1']
    %7 = vsyncpa [#allocation3], 0
    // Predicated region
    $region2: #{tpu_custom_call.1} parent=1 // pred_check
      _
    $region3: #{tpu_custom_call.1} parent=1 // pred_check_branch
      %9 = sbr.rel (0) target = $region5
    $region4: #{tpu_custom_call.1} parent=1 // pred_region
      _
    $region5: #{tpu_custom_call.1} parent=1 // pred_fallthru
      _
    // Predicated region
    $region6: #{tpu_custom_call.1} parent=1 // pred_check
      _
    $region7: #{tpu_custom_call.1} parent=1 // pred_check_branch
      %11 = sbr.rel (0) target = $region9
    $region8: #{tpu_custom_call.1} parent=1 // pred_region
      _
    $region9: #{tpu_custom_call.1} parent=1 // pred_fallthru
      _
    %v12 = vld [vmem:[%s0] sm:$0xff]
    %v13 = vld [vmem:[%s0 + $0x8] sm:$0xff]
    %v14 = vld [vmem:[%s0 + $0x10] sm:$0xff]
    %v15 = vld [vmem:[%s0 + $0x18] sm:$0xff]
    %v16 = vld [vmem:[%s0 + $0x20] sm:$0xff]
    %v17 = vld [vmem:[%s0 + $0x28] sm:$0xff]
    %v18 = vld [vmem:[%s0 + $0x30] sm:$0xff]
    %v19 = vld [vmem:[%s0 + $0x38] sm:$0xff]
    %v20 = vld [vmem:[%s0 + $0x40] sm:$0xff]
    %v21 = vld [vmem:[%s0 + $0x48] sm:$0xff]
    %v22 = vld [vmem:[%s0 + $0x50] sm:$0xff]
    %v23 = vld [vmem:[%s0 + $0x58] sm:$0xff]
    %v24 = vld [vmem:[%s0 + $0x60] sm:$0xff]
    %v25 = vld [vmem:[%s0 + $0x68] sm:$0xff]
    %v26 = vld [vmem:[%s0 + $0x70] sm:$0xff]
    %v27 = vld [vmem:[%s0 + $0x78] sm:$0xff]
    %v28 = vld [vmem:[%s1] sm:$0xff]
    %v29 = vld [vmem:[%s1 + $0x8] sm:$0xff]
    %v30 = vld [vmem:[%s1 + $0x10] sm:$0xff]
    %v31 = vld [vmem:[%s1 + $0x18] sm:$0xff]
    %v32 = vld [vmem:[%s1 + $0x20] sm:$0xf]
    %v33 = vld [vmem:[%s1 + $0x28] sm:$0xf]
    %vm34 = vcmask 162816
    %v36 = vsel %vm34, %v12, 0
    %v39 = vsel %vm34, %v13, 0
    %v42 = vsel %vm34, %v14, 0
    %v45 = vsel %vm34, %v15, 0
    %v48 = vsel %vm34, %v16, 0
    %v51 = vsel %vm34, %v17, 0
    %v54 = vsel %vm34, %v18, 0
    %v57 = vsel %vm34, %v19, 0
    %v60 = vsel %vm34, %v20, 0
    %v63 = vsel %vm34, %v21, 0
    %v66 = vsel %vm34, %v22, 0
    %v69 = vsel %vm34, %v23, 0
    %v72 = vsel %vm34, %v24, 0
    %v75 = vsel %vm34, %v25, 0
    %v78 = vsel %vm34, %v26, 0
    %v81 = vsel %vm34, %v27, 0
    %vm83 = vcmask 1043456
    %v85 = vsel %vm83, %v32, 0
    %v88 = vsel %vm83, %v33, 0
    %90 = vmatprep.subr.mxu0 %v29
    %91 = vmatpush1.msra.mxu0 %v28
    %92 = vmatprep.subr.mxu0 %v31
    %93 = vmatpush1.msra.mxu0 %v30
    %94 = vmatprep.subr.mxu0 %v88
    %95 = vmatpush1.msra.mxu0 %v85
    %96 = vmatprep.subr.mxu0 0.0
    %97 = vmatpush1.msra.mxu0 0.0
    %98 = vmatprep.subr.mxu0 0.0
    %99 = vmatpush1.msra.mxu0 0.0
    %100 = vmatprep.subr.mxu0 0.0
    %101 = vmatpush1.msra.mxu0 0.0
    %102 = vmatprep.subr.mxu0 0.0
    %103 = vmatpush1.msra.mxu0 0.0
    %104 = vmatprep.subr.mxu0 0.0
    %105 = vmatpush1.msra.mxu0 0.0
    %106 = vmatprep.subr.mxu0 0.0
    %107 = vmatpush1.msra.mxu0 0.0
    %108 = vmatprep.subr.mxu0 0.0
    %109 = vmatpush1.msra.mxu0 0.0
    %110 = vmatprep.subr.mxu0 0.0
    %111 = vmatpush1.msra.mxu0 0.0
    %112 = vmatprep.subr.mxu0 0.0
    %113 = vmatpush1.msra.mxu0 0.0
    %114 = vmatprep.subr.mxu0 0.0
    %115 = vmatpush1.msra.mxu0 0.0
    %116 = vmatprep.subr.mxu0 0.0
    %117 = vmatpush1.msra.mxu0 0.0
    %118 = vmatprep.subr.mxu0 0.0
    %119 = vmatpush1.msra.mxu0 0.0
    %120 = vmatprep.subr.mxu0 0.0
    %121 = vmatpush1.msra.mxu0 0.0
    %122 = vmatprep.subr.mxu0 0.0
    %123 = vmatpush1.msra.mxu0 0.0
    %124 = vmatprep.subr.mxu0 0.0
    %125 = vmatpush1.msra.mxu0 0.0
    %126 = vmatprep.subr.mxu0 0.0
    %127 = vmatpush1.msra.mxu0 0.0
    %128 = vmatprep.subr.mxu0 0.0
    %129 = vmatpush1.msra.mxu0 0.0
    %130 = vmatprep.subr.mxu0 0.0
    %131 = vmatpush1.msra.mxu0 0.0
    %132 = vmatprep.subr.mxu0 0.0
    %133 = vmatpush1.msra.mxu0 0.0
    %134 = vmatprep.subr.mxu0 0.0
    %135 = vmatpush1.msra.mxu0 0.0
    %136 = vmatprep.subr.mxu0 0.0
    %137 = vmatpush1.msra.mxu0 0.0
    %138 = vmatprep.subr.mxu0 0.0
    %139 = vmatpush1.msra.mxu0 0.0
    %140 = vmatprep.subr.mxu0 0.0
    %141 = vmatpush1.msra.mxu0 0.0
    %142 = vmatprep.subr.mxu0 0.0
    %143 = vmatpush1.msra.mxu0 0.0
    %144 = vmatprep.subr.mxu0 0.0
    %145 = vmatpush1.msra.mxu0 0.0
    %146 = vmatprep.subr.mxu0 0.0
    %147 = vmatpush1.msra.mxu0 0.0
    %148 = vmatprep.subr.mxu0 0.0
    %149 = vmatpush1.msra.mxu0 0.0
    %150 = vmatprep.subr.mxu0 0.0
    %151 = vmatpush1.msra.mxu0 0.0
    %152 = vmatprep.subr.mxu0 0.0
    %153 = vmatpush1.msra.mxu0 0.0
    %154 = vmatprep.mubr.f32.mxu0 0.0
    %155 = vmatmul.mubr.f32.gmra.mrb[0].mxu0 %v36
    %v156 = vpop.f32.mrb[0].mxu0
    %v157 = vadd.f32 0.0, %v156
    %v158 = vpop.f32.mrb[0].mxu0
    %v159 = vadd.f32 0.0, %v158
    %160 = vmatprep.mubr.f32.mxu0 0.0
    %161 = vmatmul.mubr.f32.gmra.mrb[0].mxu0 %v39
    %v162 = vpop.f32.mrb[0].mxu0
    %v163 = vadd.f32 0.0, %v162
    %v164 = vpop.f32.mrb[0].mxu0
    %v165 = vadd.f32 0.0, %v164
    %166 = vmatprep.mubr.f32.mxu0 0.0
    %167 = vmatmul.mubr.f32.gmra.mrb[0].mxu0 %v42
    %v168 = vpop.f32.mrb[0].mxu0
    %v169 = vadd.f32 0.0, %v168
    %v170 = vpop.f32.mrb[0].mxu0
    %v171 = vadd.f32 0.0, %v170
    %172 = vmatprep.mubr.f32.mxu0 0.0
    %173 = vmatmul.mubr.f32.gmra.mrb[0].mxu0 %v45
    %v174 = vpop.f32.mrb[0].mxu0
    %v175 = vadd.f32 0.0, %v174
    %v176 = vpop.f32.mrb[0].mxu0
    %v177 = vadd.f32 0.0, %v176
    %178 = vmatprep.mubr.f32.mxu0 0.0
    %179 = vmatmul.mubr.f32.gmra.mrb[0].mxu0 %v48
    %v180 = vpop.f32.mrb[0].mxu0
    %v181 = vadd.f32 0.0, %v180
    %v182 = vpop.f32.mrb[0].mxu0
    %v183 = vadd.f32 0.0, %v182
    %184 = vmatprep.mubr.f32.mxu0 0.0
    %185 = vmatmul.mubr.f32.gmra.mrb[0].mxu0 %v51
    %v186 = vpop.f32.mrb[0].mxu0
    %v187 = vadd.f32 0.0, %v186
    %v188 = vpop.f32.mrb[0].mxu0
    %v189 = vadd.f32 0.0, %v188
    %190 = vmatprep.mubr.f32.mxu0 0.0
    %191 = vmatmul.mubr.f32.gmra.mrb[0].mxu0 %v54
    %v192 = vpop.f32.mrb[0].mxu0
    %v193 = vadd.f32 0.0, %v192
    %v194 = vpop.f32.mrb[0].mxu0
    %v195 = vadd.f32 0.0, %v194
    %196 = vmatprep.mubr.f32.mxu0 0.0
    %197 = vmatmul.mubr.f32.gmra.mrb[0].mxu0 %v57
    %v198 = vpop.f32.mrb[0].mxu0
    %v199 = vadd.f32 0.0, %v198
    %v200 = vpop.f32.mrb[0].mxu0
    %v201 = vadd.f32 0.0, %v200
    %202 = vmatprep.mubr.f32.mxu0 0.0
    %203 = vmatmul.mubr.f32.gmra.mrb[0].mxu0 %v60
    %v204 = vpop.f32.mrb[0].mxu0
    %v205 = vadd.f32 0.0, %v204
    %v206 = vpop.f32.mrb[0].mxu0
    %v207 = vadd.f32 0.0, %v206
    %208 = vmatprep.mubr.f32.mxu0 0.0
    %209 = vmatmul.mubr.f32.gmra.mrb[0].mxu0 %v63
    %v210 = vpop.f32.mrb[0].mxu0
    %v211 = vadd.f32 0.0, %v210
    %v212 = vpop.f32.mrb[0].mxu0
    %v213 = vadd.f32 0.0, %v212
    %214 = vmatprep.mubr.f32.mxu0 0.0
    %215 = vmatmul.mubr.f32.gmra.mrb[0].mxu0 %v66
    %v216 = vpop.f32.mrb[0].mxu0
    %v217 = vadd.f32 0.0, %v216
    %v218 = vpop.f32.mrb[0].mxu0
    %v219 = vadd.f32 0.0, %v218
    %220 = vmatprep.mubr.f32.mxu0 0.0
    %221 = vmatmul.mubr.f32.gmra.mrb[0].mxu0 %v69
    %v222 = vpop.f32.mrb[0].mxu0
    %v223 = vadd.f32 0.0, %v222
    %v224 = vpop.f32.mrb[0].mxu0
    %v225 = vadd.f32 0.0, %v224
    %226 = vmatprep.mubr.f32.mxu0 0.0
    %227 = vmatmul.mubr.f32.gmra.mrb[0].mxu0 %v72
    %v228 = vpop.f32.mrb[0].mxu0
    %v229 = vadd.f32 0.0, %v228
    %v230 = vpop.f32.mrb[0].mxu0
    %v231 = vadd.f32 0.0, %v230
    %232 = vmatprep.mubr.f32.mxu0 0.0
    %233 = vmatmul.mubr.f32.gmra.mrb[0].mxu0 %v75
    %v234 = vpop.f32.mrb[0].mxu0
    %v235 = vadd.f32 0.0, %v234
    %v236 = vpop.f32.mrb[0].mxu0
    %v237 = vadd.f32 0.0, %v236
    %238 = vmatprep.mubr.f32.mxu0 0.0
    %239 = vmatmul.mubr.f32.gmra.mrb[0].mxu0 %v78
    %v240 = vpop.f32.mrb[0].mxu0
    %v241 = vadd.f32 0.0, %v240
    %v242 = vpop.f32.mrb[0].mxu0
    %v243 = vadd.f32 0.0, %v242
    %244 = vmatprep.mubr.f32.mxu0 0.0
    %245 = vmatmul.mubr.f32.gmra.mrb[0].mxu0 %v81
    %v246 = vpop.f32.mrb[0].mxu0
    %v247 = vadd.f32 0.0, %v246
    %v248 = vpop.f32.mrb[0].mxu0
    %v249 = vadd.f32 0.0, %v248
    %250 = vdwg.mxu0
    %251 = vst [vmem:[#allocation2] sm:$0xff] %v157
    %252 = vst [vmem:[#allocation2 + $0x8] sm:$0xff] %v159
    %253 = vst [vmem:[#allocation2 + $0x10] sm:$0xff] %v163
    %254 = vst [vmem:[#allocation2 + $0x18] sm:$0xff] %v165
    %255 = vst [vmem:[#allocation2 + $0x20] sm:$0xff] %v169
    %256 = vst [vmem:[#allocation2 + $0x28] sm:$0xff] %v171
    %257 = vst [vmem:[#allocation2 + $0x30] sm:$0xff] %v175
    %258 = vst [vmem:[#allocation2 + $0x38] sm:$0xff] %v177
    %259 = vst [vmem:[#allocation2 + $0x40] sm:$0xff] %v181
    %260 = vst [vmem:[#allocation2 + $0x48] sm:$0xff] %v183
    %261 = vst [vmem:[#allocation2 + $0x50] sm:$0xff] %v187
    %262 = vst [vmem:[#allocation2 + $0x58] sm:$0xff] %v189
    %263 = vst [vmem:[#allocation2 + $0x60] sm:$0xff] %v193
    %264 = vst [vmem:[#allocation2 + $0x68] sm:$0xff] %v195
    %265 = vst [vmem:[#allocation2 + $0x70] sm:$0xff] %v199
    %266 = vst [vmem:[#allocation2 + $0x78] sm:$0xff] %v201
    %267 = vst [vmem:[#allocation2 + $0x80] sm:$0xff] %v205
    %268 = vst [vmem:[#allocation2 + $0x88] sm:$0xff] %v207
    %269 = vst [vmem:[#allocation2 + $0x90] sm:$0xff] %v211
    %270 = vst [vmem:[#allocation2 + $0x98] sm:$0xff] %v213
    %271 = vst [vmem:[#allocation2 + $0xa0] sm:$0xff] %v217
    %272 = vst [vmem:[#allocation2 + $0xa8] sm:$0xff] %v219
    %273 = vst [vmem:[#allocation2 + $0xb0] sm:$0xff] %v223
    %274 = vst [vmem:[#allocation2 + $0xb8] sm:$0xff] %v225
    %275 = vst [vmem:[#allocation2 + $0xc0] sm:$0xff] %v229
    %276 = vst [vmem:[#allocation2 + $0xc8] sm:$0xff] %v231
    %277 = vst [vmem:[#allocation2 + $0xd0] sm:$0xff] %v235
    %278 = vst [vmem:[#allocation2 + $0xd8] sm:$0xff] %v237
    %279 = vst [vmem:[#allocation2 + $0xe0] sm:$0xff] %v241
    %280 = vst [vmem:[#allocation2 + $0xe8] sm:$0xff] %v243
    %281 = vst [vmem:[#allocation2 + $0xf0] sm:$0xff] %v247
    %282 = vst [vmem:[#allocation2 + $0xf8] sm:$0xff] %v249
    // Predicated region
    $region10: #{tpu_custom_call.1} parent=1 // pred_check
      _
    $region11: #{tpu_custom_call.1} parent=1 // pred_check_branch
      %284 = sbr.rel (0) target = $region13
    $region12: #{tpu_custom_call.1} parent=1 // pred_region
      %s286 = ssub.s32 4096, 4096
      %287 = vsyncadd [#allocation3], %s286
      %s288 = sshll.u32 [#allocation2], 4
      %s289 = int_to_ptr.vmem [resolvable:$true] %s288
      %294 = dma.vmem_to_hbm [thread:$0]  %s289, 4096, %s2, [#allocation3], 256, 256, 16
    $region13: #{tpu_custom_call.1} parent=1 // pred_fallthru
      _
    // Predicated region
    $region14: #{tpu_custom_call.1} parent=1 // pred_check
      _
    $region15: #{tpu_custom_call.1} parent=1 // pred_check_branch
      %296 = sbr.rel (0) target = $region17
    $region16: #{tpu_custom_call.1} parent=1 // pred_region
      %297 = dma.done [#allocation3], 4096
    $region17: #{tpu_custom_call.1} parent=1 // pred_fallthru
      _
    %298 = vsyncpa [#allocation3], 1

</llo_original>
